<compile_context>
chip_gen: v6e
topology: v6e:2x2x1
jax: 0.10.0
libtpu: 0.0.40
codegen_flags: <defaults>
</compile_context>

<pallas_src>
import functools

import jax
import jax.numpy as jnp
from jax.experimental import pallas as pl
from jax.experimental.pallas import tpu as pltpu

LANES = 128
SUBLANES = 8
TILE_ROWS = 4096  # 4096 x 128 f32 = 2 MiB per input block


def _round_up(x, m):
    return (x + m - 1) // m * m


def _block_reduce(x, block_rows):
    """(block_rows, 128) -> (8, 128) partial sum with parallel accumulators."""
    g = block_rows // SUBLANES
    # Up to 4 independent accumulation chains so the 4 VALU slots can pipeline
    # (a single accumulator is a serial ~g-deep dependent add chain).
    if g % 4 == 0:
        p = 4
    elif g % 2 == 0:
        p = 2
    else:
        p = 1
    if p > 1:
        part = jnp.sum(x.reshape(g // p, p * SUBLANES, LANES), axis=0)
        return jnp.sum(part.reshape(p, SUBLANES, LANES), axis=0)
    return jnp.sum(x.reshape(g, SUBLANES, LANES), axis=0)


def _sil1_kernel(o_ref, t_ref, sum_ref, cnt_ref, *, rows_total, block_rows,
                 mask_last_block):
    o = o_ref[...].astype(jnp.float32)
    t = t_ref[...].astype(jnp.float32)

    def emit(valid):
        diff = jnp.where(valid, jnp.abs(o - t), jnp.float32(0.0))
        sum_ref[...] = _block_reduce(diff, block_rows)
        cnt_ref[...] = _block_reduce(valid.astype(jnp.int32), block_rows)

    if mask_last_block:
        # Only the last block can contain rows past the real array (garbage
        # VMEM); all other blocks skip the row mask entirely.
        i = pl.program_id(0)
        is_last = i == pl.num_programs(0) - 1

        @pl.when(jnp.logical_not(is_last))
        def _():
            emit((o > 0.0) & (t > 0.0))

        @pl.when(is_last)
        def _():
            row = (jax.lax.broadcasted_iota(jnp.int32, (block_rows, LANES), 0)
                   + i * block_rows)
            emit((o > 0.0) & (t > 0.0) & (row < rows_total))
    else:
        emit((o > 0.0) & (t > 0.0))


def sil1_loss(output, target):
    assert output.shape == target.shape
    o_flat = output.reshape(-1)
    t_flat = target.reshape(-1)
    n = o_flat.shape[0]

    n_main = (n // LANES) * LANES
    rows = n_main // LANES

    # Ragged (<128-element) tail is folded in the wrapper instead of padding
    # both full arrays in HBM.
    # TODO(synk): the aligned-prefix slice below may still materialize a copy
    # for the pallas_call operand; a fully zero-copy ragged path would need
    # memory_space=pl.ANY + manual DMA, which is overkill for this kernel.
    if n_main != n:
        o_tail = o_flat[n_main:].astype(jnp.float32)
        t_tail = t_flat[n_main:].astype(jnp.float32)
        tail_valid = (o_tail > 0.0) & (t_tail > 0.0)
        tail_sum = jnp.sum(jnp.where(tail_valid, jnp.abs(o_tail - t_tail), 0.0))
        tail_cnt = jnp.sum(tail_valid.astype(jnp.int32))
    else:
        tail_sum = jnp.float32(0.0)
        tail_cnt = jnp.int32(0)

    if rows == 0:
        total_sum, total_cnt = tail_sum, tail_cnt
    else:
        o_main = o_flat[:n_main].reshape(rows, LANES)
        t_main = t_flat[:n_main].reshape(rows, LANES)

        block_rows = min(TILE_ROWS, _round_up(rows, SUBLANES))
        num_blocks = pl.cdiv(rows, block_rows)
        mask_last_block = (rows % block_rows) != 0

        kernel = functools.partial(
            _sil1_kernel,
            rows_total=rows,
            block_rows=block_rows,
            mask_last_block=mask_last_block,
        )

        sums, cnts = pl.pallas_call(
            kernel,
            out_shape=(
                jax.ShapeDtypeStruct((num_blocks * SUBLANES, LANES), jnp.float32),
                jax.ShapeDtypeStruct((num_blocks * SUBLANES, LANES), jnp.int32),
            ),
            grid=(num_blocks,),
            in_specs=[
                pl.BlockSpec((block_rows, LANES), lambda i: (i, 0)),
                pl.BlockSpec((block_rows, LANES), lambda i: (i, 0)),
            ],
            out_specs=(
                pl.BlockSpec((SUBLANES, LANES), lambda i: (i, 0)),
                pl.BlockSpec((SUBLANES, LANES), lambda i: (i, 0)),
            ),
            compiler_params=pltpu.CompilerParams(
                # No carried state: every block writes its own partial tile,
                # so multi-TC parts (v7x) may shard the stream across cores.
                dimension_semantics=(pltpu.PARALLEL,),
                # 2 inputs x 2 bufs x 2 MiB tiles + f32/i32 temporaries; 48 MiB
                # cap leaves headroom and fits v7x's 64 MiB physical VMEM.
                vmem_limit_bytes=48 * 1024 * 1024,
            ),
        )(o_main, t_main)

        # Tiny wrapper-side finalize over (num_blocks*8, 128) partials.
        total_sum = jnp.sum(sums) + tail_sum
        # int32 count is exact below 2^31 valid elements (~8 GiB of f32 input).
        total_cnt = jnp.sum(cnts) + tail_cnt

    cnt_f = total_cnt.astype(jnp.float32)
    return jnp.where(
        total_cnt > 0, total_sum / jnp.maximum(cnt_f, 1.0), jnp.float32(0.0)
    )


def _sil1_ref(output, target):
    o = output.astype(jnp.float32)
    t = target.astype(jnp.float32)
    mask = (o > 0) & (t > 0)
    cnt = jnp.sum(mask.astype(jnp.float32))
    s = jnp.sum(jnp.where(mask, jnp.abs(o - t), 0.0))
    return jnp.where(cnt > 0, s / jnp.maximum(cnt, 1.0), jnp.float32(0.0))


if __name__ == "__main__":
    key = jax.random.PRNGKey(0)
    k1, k2, k3, k4, k5, k6, k7, k8 = jax.random.split(key, 8)

    # SIL1Loss has no parameters; it takes (output, target) depth-like maps.
    output = jax.random.normal(k1, (2, 4, 16, 16), dtype=jnp.float32)
    target = jax.random.normal(k2, (2, 4, 16, 16), dtype=jnp.float32)
    loss = jax.block_until_ready(sil1_loss(output, target))
    ref = jax.block_until_ready(_sil1_ref(output, target))
    assert jnp.allclose(loss, ref, rtol=1e-5, atol=1e-6), (loss, ref)

    # Ragged shape (n % 128 != 0) exercises the wrapper-side tail fold.
    out2 = jax.random.normal(k3, (2, 3, 33, 21), dtype=jnp.float32)
    tgt2 = jax.random.normal(k4, (2, 3, 33, 21), dtype=jnp.float32)
    loss2 = jax.block_until_ready(sil1_loss(out2, tgt2))
    ref2 = jax.block_until_ready(_sil1_ref(out2, tgt2))
    assert jnp.allclose(loss2, ref2, rtol=1e-5, atol=1e-6), (loss2, ref2)

    # Multi-block case with a partial last block (exercises the in-kernel
    # last-block row mask) plus a ragged tail.
    out3 = jax.random.normal(k5, (1, 8, 259, 261), dtype=jnp.float32)
    tgt3 = jax.random.normal(k6, (1, 8, 259, 261), dtype=jnp.float32)
    loss3 = jax.block_until_ready(sil1_loss(out3, tgt3))
    ref3 = jax.block_until_ready(_sil1_ref(out3, tgt3))
    assert jnp.allclose(loss3, ref3, rtol=1e-5, atol=1e-6), (loss3, ref3)

    # bf16 inputs stay narrow end-to-end (cast to f32 only inside the kernel).
    out4 = jax.random.normal(k7, (2, 4, 16, 16), dtype=jnp.bfloat16)
    tgt4 = jax.random.normal(k8, (2, 4, 16, 16), dtype=jnp.bfloat16)
    loss4 = jax.block_until_ready(sil1_loss(out4, tgt4))
    ref4 = jax.block_until_ready(_sil1_ref(out4, tgt4))
    assert jnp.allclose(loss4, ref4, rtol=1e-4, atol=1e-5), (loss4, ref4)

    # Tiny (< 128-element) input: pure wrapper path, no pallas_call.
    tiny_o = jax.random.normal(k1, (3, 5), dtype=jnp.float32)
    tiny_t = jax.random.normal(k2, (3, 5), dtype=jnp.float32)
    tiny = jax.block_until_ready(sil1_loss(tiny_o, tiny_t))
    tiny_ref = jax.block_until_ready(_sil1_ref(tiny_o, tiny_t))
    assert jnp.allclose(tiny, tiny_ref, rtol=1e-5, atol=1e-6), (tiny, tiny_ref)

    # Empty-mask branch (all-negative inputs -> 0), matching torch's `return 0`.
    zero_loss = jax.block_until_ready(
        sil1_loss(-jnp.abs(output) - 1.0, -jnp.abs(target) - 1.0)
    )
    assert zero_loss == 0.0

    print("KERNEL_OK")
</pallas_src>

<mosaic_0001>
module attributes {stable_mosaic.version = 11 : i64} {
  func.func @_sil1_kernel(%arg0: i32, %arg1: memref<16x128xf32, #tpu.memory_space<vmem>>, %arg2: memref<16x128xf32, #tpu.memory_space<vmem>>, %arg3: memref<8x128xf32, #tpu.memory_space<vmem>>, %arg4: memref<8x128xi32, #tpu.memory_space<vmem>>) attributes {dimension_semantics = [#tpu.dimension_semantics<parallel>], iteration_bounds = array<i64: 1>, scalar_prefetch = 0 : i64, scratch_operands = 0 : i64, tpu.core_type = #tpu.core_type<tc>, window_params = [{transform_indices = @transform_0, window_bounds = array<i64: 16, 128>}, {transform_indices = @transform_1, window_bounds = array<i64: 16, 128>}, {transform_indices = @transform_2, window_bounds = array<i64: 8, 128>}, {transform_indices = @transform_3, window_bounds = array<i64: 8, 128>}]} {
    %c0 = arith.constant 0 : index
    %c0_0 = arith.constant 0 : index
    %0 = vector.load %arg1[%c0, %c0_0] : memref<16x128xf32, #tpu.memory_space<vmem>>, vector<16x128xf32>
    %c0_1 = arith.constant 0 : index
    %c0_2 = arith.constant 0 : index
    %1 = vector.load %arg2[%c0_1, %c0_2] : memref<16x128xf32, #tpu.memory_space<vmem>>, vector<16x128xf32>
    %cst = arith.constant 0.000000e+00 : f32
    %2 = vector.broadcast %cst : f32 to vector<16x128xf32>
    %3 = arith.cmpf ogt, %0, %2 : vector<16x128xf32>
    %cst_3 = arith.constant 0.000000e+00 : f32
    %4 = vector.broadcast %cst_3 : f32 to vector<16x128xf32>
    %5 = arith.cmpf ogt, %1, %4 : vector<16x128xf32>
    %6 = arith.andi %3, %5 : vector<16x128xi1>
    %7 = arith.subf %0, %1 : vector<16x128xf32>
    %8 = math.absf %7 : vector<16x128xf32>
    %cst_4 = arith.constant 0.000000e+00 : f32
    %9 = vector.broadcast %cst_4 : f32 to vector<16x128xf32>
    %10 = arith.select %6, %8, %9 : vector<16x128xi1>, vector<16x128xf32>
    %11 = vector.shape_cast %10 : vector<16x128xf32> to vector<1x16x128xf32>
    %cst_5 = arith.constant dense<0.000000e+00> : vector<16x128xf32>
    %12 = vector.multi_reduction <add>, %11, %cst_5 [0] : vector<1x16x128xf32> to vector<16x128xf32>
    %13 = vector.shape_cast %12 : vector<16x128xf32> to vector<2x8x128xf32>
    %cst_6 = arith.constant dense<0.000000e+00> : vector<8x128xf32>
    %14 = vector.multi_reduction <add>, %13, %cst_6 [0] : vector<2x8x128xf32> to vector<8x128xf32>
    %c0_7 = arith.constant 0 : index
    %c0_8 = arith.constant 0 : index
    %15 = vector.load %arg3[%c0_7, %c0_8] : memref<8x128xf32, #tpu.memory_space<vmem>>, vector<8x128xf32>
    tpu.vector_store %arg3[%c0_7, %c0_8], %14 {strides = array<i32>} : memref<8x128xf32, #tpu.memory_space<vmem>>, vector<8x128xf32>,
    %16 = arith.extui %6 : vector<16x128xi1> to vector<16x128xi32>
    %17 = vector.shape_cast %16 : vector<16x128xi32> to vector<1x16x128xi32>
    %cst_9 = arith.constant dense<0> : vector<16x128xi32>
    %18 = vector.multi_reduction <add>, %17, %cst_9 [0] : vector<1x16x128xi32> to vector<16x128xi32>
    %19 = vector.shape_cast %18 : vector<16x128xi32> to vector<2x8x128xi32>
    %cst_10 = arith.constant dense<0> : vector<8x128xi32>
    %20 = vector.multi_reduction <add>, %19, %cst_10 [0] : vector<2x8x128xi32> to vector<8x128xi32>
    %c0_11 = arith.constant 0 : index
    %c0_12 = arith.constant 0 : index
    %21 = vector.load %arg4[%c0_11, %c0_12] : memref<8x128xi32, #tpu.memory_space<vmem>>, vector<8x128xi32>
    tpu.vector_store %arg4[%c0_11, %c0_12], %20 {strides = array<i32>} : memref<8x128xi32, #tpu.memory_space<vmem>>, vector<8x128xi32>,
    return
  }
  func.func @transform_0(%arg0: i32) -> (i32, i32) {
    %c0_i32 = arith.constant 0 : i32
    %c0_i32_0 = arith.constant 0 : i32
    return %arg0, %c0_i32 : i32, i32
  }
  func.func @transform_1(%arg0: i32) -> (i32, i32) {
    %c0_i32 = arith.constant 0 : i32
    %c0_i32_0 = arith.constant 0 : i32
    return %arg0, %c0_i32 : i32, i32
  }
  func.func @transform_2(%arg0: i32) -> (i32, i32) {
    %c0_i32 = arith.constant 0 : i32
    %c0_i32_0 = arith.constant 0 : i32
    return %arg0, %c0_i32 : i32, i32
  }
  func.func @transform_3(%arg0: i32) -> (i32, i32) {
    %c0_i32 = arith.constant 0 : i32
    %c0_i32_0 = arith.constant 0 : i32
    return %arg0, %c0_i32 : i32, i32
  }
}

</mosaic_0001>

<llo_original>
// kernel: tpu_custom_call.1
$region0: #{tpu_custom_call.1}
  #allocation0 [shape = 'u32[]', space=smem, size = 0x4, offset = 0x4, fixed_abs, tag = 'smem constant byte address 0x4 - core index']
  #allocation1 [shape = 'u32[144,128]{1,0:T(1,128)}', space=vmem, size = 0x12000, scoped, tag = 'internal scratch']
  %s0 = inlined_call_operand.hbm [shape: f32[16,128], index: 0, kind: input, shape index: {}]
  %s1 = inlined_call_operand.hbm [shape: f32[16,128], index: 1, kind: input, shape index: {}]
  %s2 = inlined_call_operand.hbm [shape: f32[8,128], index: 2, kind: output, shape index: {0}]
  %s3 = inlined_call_operand.hbm [shape: s32[8,128], index: 3, kind: output, shape index: {1}]
  %4 = xla_tuple %s2, %s3
  %s5 = sld [smem:[#allocation0]]
  $region34: #{tpu_custom_call.1} parent=0
    _
  %s7 = ssub.s32 1, %s5
  %s8 = scalar_select 0, %s7, %s5
  $region1: #{tpu_custom_call.1} parent=0
    #allocation2 [shape = 'u8[8192]{0}', space=vmem, size = 0x2000, scoped, tag = 'input window, operand 0, single buffered']
    #allocation3 [shape = 's32[1]{0}', space=sflag, size = 0x4, scoped, tag = 'scoped memory for tpu_custom_call.1']
    #allocation4 [shape = 's32[1]{0}', space=sflag, size = 0x4, scoped, tag = 'scoped memory for tpu_custom_call.1']
    #allocation5 [shape = 'u8[8192]{0}', space=vmem, size = 0x2000, scoped, tag = 'input window, operand 1, single buffered']
    #allocation6 [shape = 's32[1]{0}', space=sflag, size = 0x4, scoped, tag = 'scoped memory for tpu_custom_call.1']
    #allocation7 [shape = 'u8[4096]{0}', space=vmem, size = 0x1000, scoped, tag = 'output window, operand 0, single buffered']
    #allocation8 [shape = 'u8[4096]{0}', space=vmem, size = 0x1000, scoped, tag = 'output window, operand 1, single buffered']
    #allocation9 [shape = 's32[1]{0}', space=sflag, size = 0x4, scoped, tag = 'scoped memory for tpu_custom_call.1']
    %9 = vsyncpa [#allocation3], 0
    %10 = vsyncpa [#allocation6], 0
    %11 = vsyncpa [#allocation4], 0
    %12 = vsyncpa [#allocation9], 0
    // Predicated region
    $region2: #{tpu_custom_call.1} parent=1 // pred_check
      _
    $region3: #{tpu_custom_call.1} parent=1 // pred_check_branch
      %14 = sbr.rel (0) target = $region5
    $region4: #{tpu_custom_call.1} parent=1 // pred_region
      %s16 = ssub.s32 256, 256
      %17 = vsyncadd [#allocation3], %s16
      %s18 = sshll.u32 [#allocation2], 4
      %s19 = int_to_ptr.vmem [resolvable:$true] %s18
      %24 = dma.hbm_to_vmem [thread:$0]  %s0, 256, %s19, [#allocation3], 128, 128, 8
    $region5: #{tpu_custom_call.1} parent=1 // pred_fallthru
      _
    // Predicated region
    $region6: #{tpu_custom_call.1} parent=1 // pred_check
      _
    $region7: #{tpu_custom_call.1} parent=1 // pred_check_branch
      %26 = sbr.rel (0) target = $region9
    $region8: #{tpu_custom_call.1} parent=1 // pred_region
      %s28 = ssub.s32 256, 256
      %29 = vsyncadd [#allocation6], %s28
      %s30 = sshll.u32 [#allocation5], 4
      %s31 = int_to_ptr.vmem [resolvable:$true] %s30
      %36 = dma.hbm_to_vmem [thread:$0]  %s1, 256, %s31, [#allocation6], 128, 128, 8
    $region9: #{tpu_custom_call.1} parent=1 // pred_fallthru
      _
    // Predicated region
    $region10: #{tpu_custom_call.1} parent=1 // pred_check
      _
    $region11: #{tpu_custom_call.1} parent=1 // pred_check_branch
      %38 = sbr.rel (0) target = $region13
    $region12: #{tpu_custom_call.1} parent=1 // pred_region
      %39 = dma.done [#allocation3], 256
    $region13: #{tpu_custom_call.1} parent=1 // pred_fallthru
      _
    // Predicated region
    $region14: #{tpu_custom_call.1} parent=1 // pred_check
      _
    $region15: #{tpu_custom_call.1} parent=1 // pred_check_branch
      %41 = sbr.rel (0) target = $region17
    $region16: #{tpu_custom_call.1} parent=1 // pred_region
      %42 = dma.done [#allocation6], 256
    $region17: #{tpu_custom_call.1} parent=1 // pred_fallthru
      _
    %v43 = vld [vmem:[#allocation2] sm:$0xff]
    %v44 = vld [vmem:[#allocation2 + $0x8] sm:$0xff]
    %v45 = vld [vmem:[#allocation5] sm:$0xff]
    %v46 = vld [vmem:[#allocation5 + $0x8] sm:$0xff]
    %vm47 = vcmp.gt.f32.partialorder %v43, 0.0
    %vm48 = vcmp.gt.f32.partialorder %v44, 0.0
    %vm49 = vcmp.gt.f32.partialorder %v45, 0.0
    %vm50 = vcmp.gt.f32.partialorder %v46, 0.0
    %vm51 = vmand %vm47, %vm49
    %vm52 = vmand %vm48, %vm50
    %v53 = vsub.f32 %v43, %v45
    %v54 = vsub.f32 %v44, %v46
    %v55 = vand.u32 2147483647, %v53
    %v56 = vand.u32 2147483647, %v54
    %v57 = vsel %vm51, %v55, 0.0
    %v58 = vsel %vm52, %v56, 0.0
    %v59 = vadd.f32 %v57, 0.0
    %v60 = vadd.f32 %v58, 0.0
    %v61 = vadd.f32 %v59, %v60
    %62 = vst [vmem:[#allocation7] sm:$0xff] %v61
    %v63 = vsel %vm51, 1, 0
    %v64 = vsel %vm52, 1, 0
    %v65 = vadd.s32 %v63, %v64
    %66 = vst [vmem:[#allocation8] sm:$0xff] %v65
    // Predicated region
    $region18: #{tpu_custom_call.1} parent=1 // pred_check
      _
    $region19: #{tpu_custom_call.1} parent=1 // pred_check_branch
      %68 = sbr.rel (0) target = $region21
    $region20: #{tpu_custom_call.1} parent=1 // pred_region
      %s70 = ssub.s32 128, 128
      %71 = vsyncadd [#allocation4], %s70
      %s73 = sshll.u32 [#allocation7], 4
      %s74 = int_to_ptr.vmem [resolvable:$true] %s73
      %76 = dma.vmem_to_hbm [thread:$0]  %s74, 128, %s2, [#allocation4]
    $region21: #{tpu_custom_call.1} parent=1 // pred_fallthru
      _
    // Predicated region
    $region22: #{tpu_custom_call.1} parent=1 // pred_check
      _
    $region23: #{tpu_custom_call.1} parent=1 // pred_check_branch
      %78 = sbr.rel (0) target = $region25
    $region24: #{tpu_custom_call.1} parent=1 // pred_region
      %s80 = ssub.s32 128, 128
      %81 = vsyncadd [#allocation9], %s80
      %s83 = sshll.u32 [#allocation8], 4
      %s84 = int_to_ptr.vmem [resolvable:$true] %s83
      %86 = dma.vmem_to_hbm [thread:$0]  %s84, 128, %s3, [#allocation9]
    $region25: #{tpu_custom_call.1} parent=1 // pred_fallthru
      _
    // Predicated region
    $region26: #{tpu_custom_call.1} parent=1 // pred_check
      _
    $region27: #{tpu_custom_call.1} parent=1 // pred_check_branch
      %88 = sbr.rel (0) target = $region29
    $region28: #{tpu_custom_call.1} parent=1 // pred_region
      %89 = dma.done [#allocation4], 128
    $region29: #{tpu_custom_call.1} parent=1 // pred_fallthru
      _
    // Predicated region
    $region30: #{tpu_custom_call.1} parent=1 // pred_check
      _
    $region31: #{tpu_custom_call.1} parent=1 // pred_check_branch
      %91 = sbr.rel (0) target = $region33
    $region32: #{tpu_custom_call.1} parent=1 // pred_region
      %92 = dma.done [#allocation9], 128
    $region33: #{tpu_custom_call.1} parent=1 // pred_fallthru
      _
    %93 = vsyncpa [#allocation3], 1
    %94 = vsyncpa [#allocation6], 1
    %95 = vsyncpa [#allocation4], 1
    %96 = vsyncpa [#allocation9], 1

</llo_original>
